<compile_context>
chip_gen: v7x
topology: tpu7x:2x2x1
jax: 0.10.0
libtpu: 0.0.40
codegen_flags: <defaults>
</compile_context>

<pallas_src>
import functools
from typing import NamedTuple, Optional

import jax
import jax.numpy as jnp
from jax.experimental import pallas as pl
from jax.experimental.pallas import tpu as pltpu

LN_EPS = 1e-5  # PyTorch nn.LayerNorm default


def _round_up(n, m):
    return ((n + m - 1) // m) * m


def _cdiv(a, b):
    return -(-a // b)


def _vmem_capacity_bytes() -> int:
    """Physical VMEM per TensorCore (generation-aware, with static fallback)."""
    try:
        return int(pltpu.get_tpu_info().vmem_capacity_bytes)
    except Exception:
        pass
    try:
        kind = jax.devices()[0].device_kind.lower()
    except Exception:
        kind = ""
    if "v7" in kind:
        return 64 * 1024 * 1024
    return 128 * 1024 * 1024          # v5e / v6e


def _vmem_limit_bytes() -> int:
    # Leave ~25% headroom for compiler-internal scratch / double-buffer slack:
    # 48 MiB on v7x, 96 MiB on v5e / v6e.
    return (_vmem_capacity_bytes() * 3) // 4


def _layernorm_rows(r, gamma, beta):
    """Row-wise LayerNorm over the last axis; two-pass variance, all f32."""
    inv_e = 1.0 / r.shape[-1]
    mean = jnp.sum(r, axis=-1, keepdims=True) * inv_e
    d = r - mean
    var = jnp.sum(d * d, axis=-1, keepdims=True) * inv_e
    return d * jax.lax.rsqrt(var + LN_EPS) * gamma + beta


# ----------------------------- kernels --------------------------------------


def _ffn_ln_single_kernel(x_ref, w1t_ref, b1_ref, w2t_ref, b2_ref, g_ref,
                          beta_ref, o_ref):
    """grid = (row tiles,).  Weights fully VMEM-resident; no accumulator."""
    x = x_ref[...]
    xm = x.astype(w1t_ref.dtype)                        # bf16 MXU operands
    h = jnp.dot(xm, w1t_ref[...], preferred_element_type=jnp.float32)
    h = jnp.maximum(h + b1_ref[...].astype(jnp.float32), 0.0)      # ReLU
    y = jnp.dot(h.astype(w2t_ref.dtype), w2t_ref[...],
                preferred_element_type=jnp.float32)
    r = x.astype(jnp.float32) + y + b2_ref[...].astype(jnp.float32)
    out = _layernorm_rows(r, g_ref[...].astype(jnp.float32),
                          beta_ref[...].astype(jnp.float32))
    o_ref[...] = out.astype(o_ref.dtype)


def _ffn_ln_chunked_kernel(x_ref, w1t_ref, b1_ref, w2t_ref, b2_ref, g_ref,
                           beta_ref, o_ref, y_acc):
    """grid = (row tiles, H chunks >= 2).  Accumulate y over hidden chunks;
    the last chunk folds its dot result straight into the residual."""
    k = pl.program_id(1)
    nk = pl.num_programs(1)

    x = x_ref[...]
    xm = x.astype(w1t_ref.dtype)
    h = jnp.dot(xm, w1t_ref[...], preferred_element_type=jnp.float32)
    h = jnp.maximum(h + b1_ref[...].astype(jnp.float32), 0.0)
    y = jnp.dot(h.astype(w2t_ref.dtype), w2t_ref[...],
                preferred_element_type=jnp.float32)

    @pl.when(k == 0)
    def _():                                # first chunk: plain store (no init)
        y_acc[...] = y

    @pl.when((k > 0) & (k < nk - 1))
    def _():                                # middle chunks: accumulate
        y_acc[...] += y

    @pl.when(k == nk - 1)
    def _():                                # last chunk: residual + LayerNorm
        r = (x.astype(jnp.float32) + y_acc[...] + y
             + b2_ref[...].astype(jnp.float32))
        out = _layernorm_rows(r, g_ref[...].astype(jnp.float32),
                              beta_ref[...].astype(jnp.float32))
        o_ref[...] = out.astype(o_ref.dtype)


# --------------------------- parameter prep ---------------------------------


class FFNParams(NamedTuple):
    w1t: jax.Array     # (E, H_pad)  transposed Conv1d(E->H, 1).weight
    b1: jax.Array      # (1, H_pad)
    w2t: jax.Array     # (H_pad, E)  transposed Conv1d(H->E, 1).weight
    b2: jax.Array      # (1, E)
    gamma: jax.Array   # (1, E)
    beta: jax.Array    # (1, E)
    th: int            # hidden chunk width (== H_pad when single-chunk)


def _plan_hidden_chunks(E, H, w_itemsize, act_itemsize, tm, max_th=None):
    """Pick the hidden-chunk width th (multiple of 128) and the padded H so
    that per-step VMEM footprint fits the generation's budget.  Prefers a
    single chunk (resident weights) whenever it fits."""
    budget = _vmem_limit_bytes() - (4 << 20)        # margin under vmem limit
    H128 = _round_up(H, 128)
    if max_th is not None:
        max_th = max(128, _round_up(int(max_th), 128))

    def footprint(th, chunked):
        wb = 2 * 2 * E * th * w_itemsize            # W1^T + W2^T chunks, 2 bufs
        xb = 2 * tm * E * act_itemsize              # x row tile, double-buffered
        ob = 2 * tm * E * act_itemsize              # out row tile
        acc = tm * E * 4 if chunked else 0          # f32 y accumulator scratch
        hid = 2 * tm * th * 4                       # f32 hidden temporaries
        small = 4 * (th + 3 * E) * 4                # biases / gamma / beta
        return wb + xb + ob + acc + hid + small

    n = 1
    while True:
        th = _round_up(_cdiv(H128, n), 128)
        cap_ok = (max_th is None) or (th <= max_th)
        if cap_ok and (footprint(th, n > 1) <= budget or th == 128):
            return th, n * th
        n += 1


def prepare_ffn_params(w1, b1, w2, b2, gamma, beta, *,
                       matmul_dtype: Optional[jnp.dtype] = jnp.bfloat16,
                       tm: int = 256,
                       max_th: Optional[int] = None) -> FFNParams:
    """One-time weight preprocessing (transpose / pad / cast), hoisted out of
    the per-call hot path.  w1: (H, E, 1), w2: (E, H, 1) PyTorch Conv1d(k=1)."""
    H, E, _ = w1.shape
    w1t = jnp.squeeze(w1, -1).T          # (E, H)
    w2t = jnp.squeeze(w2, -1).T          # (H, E)
    if matmul_dtype is not None:
        w1t = w1t.astype(matmul_dtype)
        w2t = w2t.astype(matmul_dtype)

    th, H_pad = _plan_hidden_chunks(E, H, jnp.dtype(w1t.dtype).itemsize,
                                    4, tm, max_th)
    b1r = b1.reshape(1, H)
    if H_pad != H:                       # zero-padded hidden units contribute 0
        w1t = jnp.pad(w1t, ((0, 0), (0, H_pad - H)))
        w2t = jnp.pad(w2t, ((0, H_pad - H), (0, 0)))
        b1r = jnp.pad(b1r, ((0, 0), (0, H_pad - H)))

    return FFNParams(w1t, b1r, w2t, b2.reshape(1, E),
                     gamma.reshape(1, E), beta.reshape(1, E), int(th))


# ------------------------------- forward ------------------------------------


@functools.partial(jax.jit, static_argnames=("th", "tm"))
def _positionwise_ffn_impl(x, w1t, b1, w2t, b2, gamma, beta, *, th, tm):
    B, L, E = x.shape
    H_pad = w1t.shape[1]
    assert H_pad % th == 0
    n_chunks = H_pad // th

    # Row tiling: minimize padding, keep >=2 tiles when rows allow (megacore).
    rows = B * L
    rows8 = _round_up(rows, 8)
    n_tiles = _cdiv(rows8, tm)
    if n_tiles < 2 and rows8 >= 16:
        n_tiles = 2
    tm_eff = _round_up(_cdiv(rows8, n_tiles), 8)
    rows_p = _round_up(rows8, tm_eff)
    n_tiles = rows_p // tm_eff

    x2d = x.reshape(rows, E)
    if rows_p != rows:
        x2d = jnp.pad(x2d, ((0, rows_p - rows), (0, 0)))

    vmem_limit = _vmem_limit_bytes()

    if n_chunks == 1:
        kernel = _ffn_ln_single_kernel
        grid = (n_tiles,)
        in_specs = [
            pl.BlockSpec((tm_eff, E), lambda i: (i, 0)),     # x row tile
            pl.BlockSpec((E, H_pad), lambda i: (0, 0)),      # W1^T (resident)
            pl.BlockSpec((1, H_pad), lambda i: (0, 0)),      # b1
            pl.BlockSpec((H_pad, E), lambda i: (0, 0)),      # W2^T (resident)
            pl.BlockSpec((1, E), lambda i: (0, 0)),          # b2
            pl.BlockSpec((1, E), lambda i: (0, 0)),          # ln gamma
            pl.BlockSpec((1, E), lambda i: (0, 0)),          # ln beta
        ]
        out_spec = pl.BlockSpec((tm_eff, E), lambda i: (i, 0))
        scratch = []
        dims = ("parallel",)
    else:
        kernel = _ffn_ln_chunked_kernel
        grid = (n_tiles, n_chunks)
        in_specs = [
            pl.BlockSpec((tm_eff, E), lambda i, k: (i, 0)),  # x row tile
            pl.BlockSpec((E, th), lambda i, k: (0, k)),      # W1^T chunk
            pl.BlockSpec((1, th), lambda i, k: (0, k)),      # b1 chunk
            pl.BlockSpec((th, E), lambda i, k: (k, 0)),      # W2^T chunk
            pl.BlockSpec((1, E), lambda i, k: (0, 0)),       # b2
            pl.BlockSpec((1, E), lambda i, k: (0, 0)),       # ln gamma
            pl.BlockSpec((1, E), lambda i, k: (0, 0)),       # ln beta
        ]
        out_spec = pl.BlockSpec((tm_eff, E), lambda i, k: (i, 0))
        scratch = [pltpu.VMEM((tm_eff, E), jnp.float32)]     # y accumulator
        dims = ("parallel", "arbitrary")

    out2d = pl.pallas_call(
        kernel,
        out_shape=jax.ShapeDtypeStruct((rows_p, E), x.dtype),
        grid_spec=pltpu.PrefetchScalarGridSpec(
            num_scalar_prefetch=0,
            grid=grid,
            in_specs=in_specs,
            out_specs=out_spec,
            scratch_shapes=scratch),
        compiler_params=pltpu.CompilerParams(
            dimension_semantics=dims,
            vmem_limit_bytes=vmem_limit),
    )(x2d, w1t, b1, w2t, b2, gamma, beta)

    return out2d[:rows].reshape(B, L, E)


def positionwise_ffn(x, params: FFNParams, *, tm: int = 256):
    """x: (B, L, E); params from prepare_ffn_params (weights pre-processed)."""
    return _positionwise_ffn_impl(x, params.w1t, params.b1, params.w2t,
                                  params.b2, params.gamma, params.beta,
                                  th=params.th, tm=tm)


# ------------------------------ reference -----------------------------------


def _reference(x, w1, b1, w2, b2, gamma, beta):
    # pure-JAX reference mirroring the PyTorch forward
    w1m = jnp.squeeze(w1, -1)  # (H, E)
    w2m = jnp.squeeze(w2, -1)  # (E, H)
    h = jax.nn.relu(jnp.einsum("ble,he->blh", x, w1m) + b1)
    y = jnp.einsum("blh,eh->ble", h, w2m) + b2
    r = x + y
    mean = jnp.mean(r, axis=-1, keepdims=True)
    var = jnp.mean((r - mean) ** 2, axis=-1, keepdims=True)
    return ((r - mean) * jax.lax.rsqrt(var + LN_EPS)) * gamma + beta


if __name__ == "__main__":
    # Small but lane-dense shapes (E, H multiples of 128).
    B, L, E, H = 2, 8, 128, 256
    key = jax.random.PRNGKey(0)
    kx, k1, kb1, k2, kb2, kg, kb = jax.random.split(key, 7)

    x = jax.random.normal(kx, (B, L, E), dtype=jnp.float32)

    # synthetic parameters (shapes match nn.Conv1d(k=1) / nn.LayerNorm)
    w1 = jax.random.normal(k1, (H, E, 1), dtype=jnp.float32) * 0.05
    b1 = jax.random.normal(kb1, (H,), dtype=jnp.float32) * 0.05
    w2 = jax.random.normal(k2, (E, H, 1), dtype=jnp.float32) * 0.05
    b2 = jax.random.normal(kb2, (E,), dtype=jnp.float32) * 0.05
    gamma = 1.0 + 0.1 * jax.random.normal(kg, (E,), dtype=jnp.float32)
    beta = 0.1 * jax.random.normal(kb, (E,), dtype=jnp.float32)

    ref = _reference(x, w1, b1, w2, b2, gamma, beta)

    # 1) default params: bf16 matmul path, resident weights (single chunk).
    params_bf16 = prepare_ffn_params(w1, b1, w2, b2, gamma, beta)
    out = positionwise_ffn(x, params_bf16)
    jax.block_until_ready(out)
    assert out.shape == (B, L, E) and out.dtype == x.dtype
    assert jnp.allclose(out, ref, atol=5e-2, rtol=5e-2), "mismatch (bf16 single-chunk)"

    # 2) full-f32 path, single chunk: tight tolerance vs the reference.
    params_f32 = prepare_ffn_params(w1, b1, w2, b2, gamma, beta, matmul_dtype=None)
    out_f32 = positionwise_ffn(x, params_f32)
    jax.block_until_ready(out_f32)
    assert jnp.allclose(out_f32, ref, atol=1e-4, rtol=1e-4), "mismatch (f32 single-chunk)"

    # 3) force the chunked-reduction kernel (2 hidden chunks x 2 row tiles).
    params_chunked = prepare_ffn_params(w1, b1, w2, b2, gamma, beta,
                                        matmul_dtype=None, max_th=128)
    out_ck = positionwise_ffn(x, params_chunked, tm=8)
    jax.block_until_ready(out_ck)
    assert jnp.allclose(out_ck, ref, atol=1e-4, rtol=1e-4), "mismatch (chunked)"

    print("KERNEL_OK")
</pallas_src>

<mosaic_0001>
module attributes {stable_mosaic.version = 11 : i64} {
  func.func @_ffn_ln_single_kernel(%arg0: i32, %arg1: memref<8x128xf32, #tpu.memory_space<vmem>>, %arg2: memref<128x256xbf16, #tpu.memory_space<vmem>>, %arg3: memref<1x256xf32, #tpu.memory_space<vmem>>, %arg4: memref<256x128xbf16, #tpu.memory_space<vmem>>, %arg5: memref<1x128xf32, #tpu.memory_space<vmem>>, %arg6: memref<1x128xf32, #tpu.memory_space<vmem>>, %arg7: memref<1x128xf32, #tpu.memory_space<vmem>>, %arg8: memref<8x128xf32, #tpu.memory_space<vmem>>) attributes {dimension_semantics = [#tpu.dimension_semantics<parallel>], iteration_bounds = array<i64: 2>, scalar_prefetch = 0 : i64, scratch_operands = 0 : i64, tpu.core_type = #tpu.core_type<tc>, window_params = [{transform_indices = @transform_0, window_bounds = array<i64: 8, 128>}, {pipeline_mode = #tpu.pipeline_mode<synchronous>, transform_indices = @transform_1, window_bounds = array<i64: 128, 256>}, {pipeline_mode = #tpu.pipeline_mode<synchronous>, transform_indices = @transform_2, window_bounds = array<i64: 1, 256>}, {pipeline_mode = #tpu.pipeline_mode<synchronous>, transform_indices = @transform_3, window_bounds = array<i64: 256, 128>}, {pipeline_mode = #tpu.pipeline_mode<synchronous>, transform_indices = @transform_4, window_bounds = array<i64: 1, 128>}, {pipeline_mode = #tpu.pipeline_mode<synchronous>, transform_indices = @transform_5, window_bounds = array<i64: 1, 128>}, {pipeline_mode = #tpu.pipeline_mode<synchronous>, transform_indices = @transform_6, window_bounds = array<i64: 1, 128>}, {transform_indices = @transform_7, window_bounds = array<i64: 8, 128>}]} {
    %c0 = arith.constant 0 : index
    %c0_0 = arith.constant 0 : index
    %0 = vector.load %arg1[%c0, %c0_0] : memref<8x128xf32, #tpu.memory_space<vmem>>, vector<8x128xf32>
    %1 = arith.truncf %0 : vector<8x128xf32> to vector<8x128xbf16>
    %c0_1 = arith.constant 0 : index
    %c0_2 = arith.constant 0 : index
    %2 = vector.load %arg2[%c0_1, %c0_2] : memref<128x256xbf16, #tpu.memory_space<vmem>>, vector<128x256xbf16>
    %cst = arith.constant dense<0.000000e+00> : vector<8x256xf32>
    %3 = tpu.matmul %1, %2, %cst {dimension_numbers = #tpu.dot_dimension_numbers<[1], [0], [0], [1], [0, 0, 1, 1], [], []>} : vector<8x128xbf16>, vector<128x256xbf16>, vector<8x256xf32> -> vector<8x256xf32>
    %c0_3 = arith.constant 0 : index
    %c0_4 = arith.constant 0 : index
    %4 = vector.load %arg3[%c0_3, %c0_4] : memref<1x256xf32, #tpu.memory_space<vmem>>, vector<1x256xf32>
    %5 = vector.broadcast %4 : vector<1x256xf32> to vector<8x256xf32>
    %6 = arith.addf %3, %5 : vector<8x256xf32>
    %cst_5 = arith.constant 0.000000e+00 : f32
    %7 = vector.broadcast %cst_5 : f32 to vector<8x256xf32>
    %8 = arith.maximumf %6, %7 : vector<8x256xf32>
    %9 = arith.truncf %8 : vector<8x256xf32> to vector<8x256xbf16>
    %c0_6 = arith.constant 0 : index
    %c0_7 = arith.constant 0 : index
    %10 = vector.load %arg4[%c0_6, %c0_7] : memref<256x128xbf16, #tpu.memory_space<vmem>>, vector<256x128xbf16>
    %cst_8 = arith.constant dense<0.000000e+00> : vector<8x128xf32>
    %11 = tpu.matmul %9, %10, %cst_8 {dimension_numbers = #tpu.dot_dimension_numbers<[1], [0], [0], [1], [0, 0, 1, 1], [], []>} : vector<8x256xbf16>, vector<256x128xbf16>, vector<8x128xf32> -> vector<8x128xf32>
    %12 = arith.addf %0, %11 : vector<8x128xf32>
    %c0_9 = arith.constant 0 : index
    %c0_10 = arith.constant 0 : index
    %13 = vector.load %arg5[%c0_9, %c0_10] : memref<1x128xf32, #tpu.memory_space<vmem>>, vector<1x128xf32>
    %14 = vector.broadcast %13 : vector<1x128xf32> to vector<8x128xf32>
    %15 = arith.addf %12, %14 : vector<8x128xf32>
    %c0_11 = arith.constant 0 : index
    %c0_12 = arith.constant 0 : index
    %16 = vector.load %arg6[%c0_11, %c0_12] : memref<1x128xf32, #tpu.memory_space<vmem>>, vector<1x128xf32>
    %c0_13 = arith.constant 0 : index
    %c0_14 = arith.constant 0 : index
    %17 = vector.load %arg7[%c0_13, %c0_14] : memref<1x128xf32, #tpu.memory_space<vmem>>, vector<1x128xf32>
    %cst_15 = arith.constant dense<0.000000e+00> : vector<8xf32>
    %18 = vector.multi_reduction <add>, %15, %cst_15 [1] : vector<8x128xf32> to vector<8xf32>
    %19 = vector.shape_cast %18 : vector<8xf32> to vector<8x1xf32>
    %cst_16 = arith.constant 7.812500e-03 : f32
    %20 = vector.broadcast %cst_16 : f32 to vector<8x1xf32>
    %21 = arith.mulf %19, %20 : vector<8x1xf32>
    %22 = vector.broadcast %21 : vector<8x1xf32> to vector<8x128xf32>
    %23 = arith.subf %15, %22 : vector<8x128xf32>
    %24 = arith.mulf %23, %23 : vector<8x128xf32>
    %cst_17 = arith.constant dense<0.000000e+00> : vector<8xf32>
    %25 = vector.multi_reduction <add>, %24, %cst_17 [1] : vector<8x128xf32> to vector<8xf32>
    %26 = vector.shape_cast %25 : vector<8xf32> to vector<8x1xf32>
    %cst_18 = arith.constant 7.812500e-03 : f32
    %27 = vector.broadcast %cst_18 : f32 to vector<8x1xf32>
    %28 = arith.mulf %26, %27 : vector<8x1xf32>
    %cst_19 = arith.constant 9.99999974E-6 : f32
    %29 = vector.broadcast %cst_19 : f32 to vector<8x1xf32>
    %30 = arith.addf %28, %29 : vector<8x1xf32>
    %31 = math.rsqrt %30 : vector<8x1xf32>
    %32 = vector.broadcast %31 : vector<8x1xf32> to vector<8x128xf32>
    %33 = arith.mulf %23, %32 : vector<8x128xf32>
    %34 = vector.broadcast %16 : vector<1x128xf32> to vector<8x128xf32>
    %35 = arith.mulf %33, %34 : vector<8x128xf32>
    %36 = vector.broadcast %17 : vector<1x128xf32> to vector<8x128xf32>
    %37 = arith.addf %35, %36 : vector<8x128xf32>
    %c0_20 = arith.constant 0 : index
    %c0_21 = arith.constant 0 : index
    %38 = vector.load %arg8[%c0_20, %c0_21] : memref<8x128xf32, #tpu.memory_space<vmem>>, vector<8x128xf32>
    tpu.vector_store %arg8[%c0_20, %c0_21], %37 {strides = array<i32>} : memref<8x128xf32, #tpu.memory_space<vmem>>, vector<8x128xf32>,
    return
  }
  func.func @transform_0(%arg0: i32) -> (i32, i32) {
    %c0_i32 = arith.constant 0 : i32
    %c0_i32_0 = arith.constant 0 : i32
    return %arg0, %c0_i32 : i32, i32
  }
  func.func @transform_1(%arg0: i32) -> (i32, i32) {
    %c0_i32 = arith.constant 0 : i32
    %c0_i32_0 = arith.constant 0 : i32
    %c0_i32_1 = arith.constant 0 : i32
    return %c0_i32, %c0_i32_0 : i32, i32
  }
  func.func @transform_2(%arg0: i32) -> (i32, i32) {
    %c0_i32 = arith.constant 0 : i32
    %c0_i32_0 = arith.constant 0 : i32
    %c0_i32_1 = arith.constant 0 : i32
    return %c0_i32, %c0_i32_0 : i32, i32
  }
  func.func @transform_3(%arg0: i32) -> (i32, i32) {
    %c0_i32 = arith.constant 0 : i32
    %c0_i32_0 = arith.constant 0 : i32
    %c0_i32_1 = arith.constant 0 : i32
    return %c0_i32, %c0_i32_0 : i32, i32
  }
  func.func @transform_4(%arg0: i32) -> (i32, i32) {
    %c0_i32 = arith.constant 0 : i32
    %c0_i32_0 = arith.constant 0 : i32
    %c0_i32_1 = arith.constant 0 : i32
    return %c0_i32, %c0_i32_0 : i32, i32
  }
  func.func @transform_5(%arg0: i32) -> (i32, i32) {
    %c0_i32 = arith.constant 0 : i32
    %c0_i32_0 = arith.constant 0 : i32
    %c0_i32_1 = arith.constant 0 : i32
    return %c0_i32, %c0_i32_0 : i32, i32
  }
  func.func @transform_6(%arg0: i32) -> (i32, i32) {
    %c0_i32 = arith.constant 0 : i32
    %c0_i32_0 = arith.constant 0 : i32
    %c0_i32_1 = arith.constant 0 : i32
    return %c0_i32, %c0_i32_0 : i32, i32
  }
  func.func @transform_7(%arg0: i32) -> (i32, i32) {
    %c0_i32 = arith.constant 0 : i32
    %c0_i32_0 = arith.constant 0 : i32
    return %arg0, %c0_i32 : i32, i32
  }
}

</mosaic_0001>

<llo_original>
// kernel: _positionwise_ffn_impl.1
$region0: #{_positionwise_ffn_impl.1}
  #allocation0 [shape = 'u32[]', space=smem, size = 0x4, offset = 0x4, fixed_abs, tag = 'smem constant byte address 0x4 - core index']
  #allocation1 [shape = 'u32[144,128]{1,0:T(1,128)}', space=vmem, size = 0x12000, scoped, tag = 'internal scratch']
  %s0 = inlined_call_operand.hbm [shape: f32[16,128], index: 0, kind: input, shape index: {}]
  %s1 = inlined_call_operand.hbm [shape: bf16[128,256], index: 1, kind: input, shape index: {}]
  %s2 = inlined_call_operand.hbm [shape: f32[1,256], index: 2, kind: input, shape index: {}]
  %s3 = inlined_call_operand.hbm [shape: bf16[256,128], index: 3, kind: input, shape index: {}]
  %s4 = inlined_call_operand.hbm [shape: f32[1,128], index: 4, kind: input, shape index: {}]
  %s5 = inlined_call_operand.hbm [shape: f32[1,128], index: 5, kind: input, shape index: {}]
  %s6 = inlined_call_operand.hbm [shape: f32[1,128], index: 6, kind: input, shape index: {}]
  %s7 = inlined_call_operand.hbm [shape: f32[16,128], index: 7, kind: output, shape index: {}]
  %s8 = sld [smem:[#allocation0]]
  $region89: #{_positionwise_ffn_impl.1} parent=0
    _
  %s10 = ssub.s32 1, %s8
  %s11 = scalar_select 0, %s10, %s8
  $region1: #{_positionwise_ffn_impl.1} parent=0
    #allocation2 [shape = 'u8[8192]{0}', space=vmem, size = 0x2000, scoped, tag = 'input window, operand 0']
    #allocation3 [shape = 's32[2]{0}', space=sflag, size = 0x8, scoped, tag = 'scoped memory for _positionwise_ffn_impl.1']
    #allocation4 [shape = 's32[2]{0}', space=sflag, size = 0x8, scoped, tag = 'scoped memory for _positionwise_ffn_impl.1']
    #allocation5 [shape = 'u8[65536]{0}', space=vmem, size = 0x10000, scoped, tag = 'input window, operand 1, single buffered']
    #allocation6 [shape = 's32[1]{0}', space=sflag, size = 0x4, scoped, tag = 'scoped memory for _positionwise_ffn_impl.1']
    #allocation7 [shape = 'u8[1024]{0}', space=vmem, size = 0x400, scoped, tag = 'input window, operand 2, single buffered']
    #allocation8 [shape = 'u8[65536]{0}', space=vmem, size = 0x10000, scoped, tag = 'input window, operand 3, single buffered']
    #allocation9 [shape = 's32[1]{0}', space=sflag, size = 0x4, scoped, tag = 'scoped memory for _positionwise_ffn_impl.1']
    #allocation10 [shape = 'u8[512]{0}', space=vmem, size = 0x400, scoped, tag = 'input window, operand 4, single buffered']
    #allocation11 [shape = 'u8[512]{0}', space=vmem, size = 0x400, scoped, tag = 'input window, operand 5, single buffered']
    #allocation12 [shape = 's32[1]{0}', space=sflag, size = 0x4, scoped, tag = 'scoped memory for _positionwise_ffn_impl.1']
    #allocation13 [shape = 'u8[512]{0}', space=vmem, size = 0x400, scoped, tag = 'input window, operand 6, single buffered']
    #allocation14 [shape = 'u8[8192]{0}', space=vmem, size = 0x2000, scoped, tag = 'output window, operand 0']
    %12 = vsyncpa [#allocation3], 0
    %s13 = scalar_lea.sflag [#allocation3], 1
    %14 = vsyncpa %s13, 0
    %15 = vsyncpa [#allocation6], 0
    %16 = vsyncpa [#allocation9], 0
    %17 = vsyncpa [#allocation12], 0
    %18 = vsyncpa [#allocation4], 0
    %s19 = scalar_lea.sflag [#allocation4], 1
    %20 = vsyncpa %s19, 0
    loop: start=0, step=1, limit=4
    $region2: #{_positionwise_ffn_impl.1} parent=1 // loop_pre_header
      _
    $region3: #{_positionwise_ffn_impl.1} parent=1 // loop_header
      %s22 = sphi 0, %s26
      %p23 = scmp.ge.s32.totalorder %s22, 4
      %s32 = sphi 0, %s34
      %s35 = sphi 0, %s32
      %s36 = sphi 0, %s35
      %s52 = sphi 0, %s36
      %s56 = sphi 0, %s56
      %s58 = sphi 0, %s56
      %s59 = sphi 0, %s58
      %s73 = sphi 0, %s59
      %s77 = sphi 0, %s77
      %s79 = sphi 0, %s77
      %s80 = sphi 0, %s79
      %s94 = sphi 0, %s80
      %s98 = sphi 0, %s98
      %s100 = sphi 0, %s98
      %s101 = sphi 0, %s100
      %s115 = sphi 0, %s101
      %s119 = sphi 0, %s119
      %s121 = sphi 0, %s119
      %s122 = sphi 0, %s121
      %s136 = sphi 0, %s122
      %s140 = sphi 0, %s140
      %s142 = sphi 0, %s140
      %s143 = sphi 0, %s142
      %s157 = sphi 0, %s143
      %s161 = sphi 0, %s161
      %s163 = sphi 0, %s161
      %s164 = sphi 0, %s163
      %s178 = sphi 0, %s164
      %s184 = sphi 0, %s186
      %s187 = sphi 0, %s184
      %s188 = sphi 0, %s187
      %s204 = sphi 0, %s188
    $region4: #{_positionwise_ffn_impl.1} parent=1 // loop_header_branch
      %25 = sbr.rel (%p23) target = $region8
    $region5: #{_positionwise_ffn_impl.1} parent=1 // loop_body
      %s27 = ssub.s32 %s22, 1
      %s28 = ssub.s32 %s22, 2
      %s29 = sadd.s32 %s22, 1
      %s30 = ssub.s32 %s22, %s29
      %p31 = scmp.eq.s32.totalorder %s30, 0
      %s33 = sadd.s32 %s32, 1
      %s34 = scalar_select %p31, %s32, %s33
      %p37 = pneg %p31
      %p38 = scmp.eq.s32.totalorder %s22, 1
      %p39 = por %p37, %p38
      %p40 = scmp.ne.s32.totalorder %s32, %s35
      %p41 = scmp.eq.s32.totalorder %s22, 0
      %p42 = por %p40, %p41
      %p43 = scmp.ne.s32.totalorder %s32, %s35
      %p44 = scmp.eq.s32.totalorder %s27, 1
      %p45 = por %p43, %p44
      %p46 = scmp.ne.s32.totalorder %s35, %s36
      %p47 = scmp.eq.s32.totalorder %s27, 0
      %p48 = por %p46, %p47
      %p49 = scmp.ne.s32.totalorder %s35, %s36
      %p50 = scmp.eq.s32.totalorder %s28, 1
      %p51 = por %p49, %p50
      %p53 = scmp.ne.s32.totalorder %s36, %s52
      %p54 = scmp.eq.s32.totalorder %s28, 0
      %p55 = por %p53, %p54
      %s57 = sadd.s32 %s56, 1
      %p60 = scmp.eq.s32.totalorder %s22, 1
      %p61 = scmp.ne.s32.totalorder %s56, %s58
      %p62 = scmp.eq.s32.totalorder %s22, 0
      %p63 = por %p61, %p62
      %p64 = scmp.ne.s32.totalorder %s56, %s58
      %p65 = scmp.eq.s32.totalorder %s27, 1
      %p66 = por %p64, %p65
      %p67 = scmp.ne.s32.totalorder %s58, %s59
      %p68 = scmp.eq.s32.totalorder %s27, 0
      %p69 = por %p67, %p68
      %p70 = scmp.ne.s32.totalorder %s58, %s59
      %p71 = scmp.eq.s32.totalorder %s28, 1
      %p72 = por %p70, %p71
      %p74 = scmp.ne.s32.totalorder %s59, %s73
      %p75 = scmp.eq.s32.totalorder %s28, 0
      %p76 = por %p74, %p75
      %s78 = sadd.s32 %s77, 1
      %p81 = scmp.eq.s32.totalorder %s22, 1
      %p82 = scmp.ne.s32.totalorder %s77, %s79
      %p83 = scmp.eq.s32.totalorder %s22, 0
      %p84 = por %p82, %p83
      %p85 = scmp.ne.s32.totalorder %s77, %s79
      %p86 = scmp.eq.s32.totalorder %s27, 1
      %p87 = por %p85, %p86
      %p88 = scmp.ne.s32.totalorder %s79, %s80
      %p89 = scmp.eq.s32.totalorder %s27, 0
      %p90 = por %p88, %p89
      %p91 = scmp.ne.s32.totalorder %s79, %s80
      %p92 = scmp.eq.s32.totalorder %s28, 1
      %p93 = por %p91, %p92
      %p95 = scmp.ne.s32.totalorder %s80, %s94
      %p96 = scmp.eq.s32.totalorder %s28, 0
      %p97 = por %p95, %p96
      %s99 = sadd.s32 %s98, 1
      %p102 = scmp.eq.s32.totalorder %s22, 1
      %p103 = scmp.ne.s32.totalorder %s98, %s100
      %p104 = scmp.eq.s32.totalorder %s22, 0
      %p105 = por %p103, %p104
      %p106 = scmp.ne.s32.totalorder %s98, %s100
      %p107 = scmp.eq.s32.totalorder %s27, 1
      %p108 = por %p106, %p107
      %p109 = scmp.ne.s32.totalorder %s100, %s101
      %p110 = scmp.eq.s32.totalorder %s27, 0
      %p111 = por %p109, %p110
      %p112 = scmp.ne.s32.totalorder %s100, %s101
      %p113 = scmp.eq.s32.totalorder %s28, 1
      %p114 = por %p112, %p113
      %p116 = scmp.ne.s32.totalorder %s101, %s115
      %p117 = scmp.eq.s32.totalorder %s28, 0
      %p118 = por %p116, %p117
      %s120 = sadd.s32 %s119, 1
      %p123 = scmp.eq.s32.totalorder %s22, 1
      %p124 = scmp.ne.s32.totalorder %s119, %s121
      %p125 = scmp.eq.s32.totalorder %s22, 0
      %p126 = por %p124, %p125
      %p127 = scmp.ne.s32.totalorder %s119, %s121
      %p128 = scmp.eq.s32.totalorder %s27, 1
      %p129 = por %p127, %p128
      %p130 = scmp.ne.s32.totalorder %s121, %s122
      %p131 = scmp.eq.s32.totalorder %s27, 0
      %p132 = por %p130, %p131
      %p133 = scmp.ne.s32.totalorder %s121, %s122
      %p134 = scmp.eq.s32.totalorder %s28, 1
      %p135 = por %p133, %p134
      %p137 = scmp.ne.s32.totalorder %s122, %s136
      %p138 = scmp.eq.s32.totalorder %s28, 0
      %p139 = por %p137, %p138
      %s141 = sadd.s32 %s140, 1
      %p144 = scmp.eq.s32.totalorder %s22, 1
      %p145 = scmp.ne.s32.totalorder %s140, %s142
      %p146 = scmp.eq.s32.totalorder %s22, 0
      %p147 = por %p145, %p146
      %p148 = scmp.ne.s32.totalorder %s140, %s142
      %p149 = scmp.eq.s32.totalorder %s27, 1
      %p150 = por %p148, %p149
      %p151 = scmp.ne.s32.totalorder %s142, %s143
      %p152 = scmp.eq.s32.totalorder %s27, 0
      %p153 = por %p151, %p152
      %p154 = scmp.ne.s32.totalorder %s142, %s143
      %p155 = scmp.eq.s32.totalorder %s28, 1
      %p156 = por %p154, %p155
      %p158 = scmp.ne.s32.totalorder %s143, %s157
      %p159 = scmp.eq.s32.totalorder %s28, 0
      %p160 = por %p158, %p159
      %s162 = sadd.s32 %s161, 1
      %p165 = scmp.eq.s32.totalorder %s22, 1
      %p166 = scmp.ne.s32.totalorder %s161, %s163
      %p167 = scmp.eq.s32.totalorder %s22, 0
      %p168 = por %p166, %p167
      %p169 = scmp.ne.s32.totalorder %s161, %s163
      %p170 = scmp.eq.s32.totalorder %s27, 1
      %p171 = por %p169, %p170
      %p172 = scmp.ne.s32.totalorder %s163, %s164
      %p173 = scmp.eq.s32.totalorder %s27, 0
      %p174 = por %p172, %p173
      %p175 = scmp.ne.s32.totalorder %s163, %s164
      %p176 = scmp.eq.s32.totalorder %s28, 1
      %p177 = por %p175, %p176
      %p179 = scmp.ne.s32.totalorder %s164, %s178
      %p180 = scmp.eq.s32.totalorder %s28, 0
      %p181 = por %p179, %p180
      %s182 = ssub.s32 %s22, %s29
      %p183 = scmp.eq.s32.totalorder %s182, 0
      %s185 = sadd.s32 %s184, 1
      %s186 = scalar_select %p183, %s184, %s185
      %p189 = pneg %p183
      %p190 = scmp.eq.s32.totalorder %s22, 1
      %p191 = por %p189, %p190
      %p192 = scmp.ne.s32.totalorder %s184, %s187
      %p193 = scmp.eq.s32.totalorder %s22, 0
      %p194 = por %p192, %p193
      %p195 = scmp.ne.s32.totalorder %s184, %s187
      %p196 = scmp.eq.s32.totalorder %s27, 1
      %p197 = por %p195, %p196
      %p198 = scmp.ne.s32.totalorder %s187, %s188
      %p199 = scmp.eq.s32.totalorder %s27, 0
      %p200 = por %p198, %p199
      %p201 = scmp.ne.s32.totalorder %s187, %s188
      %p202 = scmp.eq.s32.totalorder %s28, 1
      %p203 = por %p201, %p202
      %p205 = scmp.ne.s32.totalorder %s188, %s204
      %p206 = scmp.eq.s32.totalorder %s28, 0
      %p207 = por %p205, %p206
      %p208 = scmp.le.s32.totalorder 1, %s22
      %p209 = scmp.lt.s32.totalorder %s22, 3
      %p210 = pnand %p208, %p209
      %p211 = pneg %p210
      // Predicated region
      $region9: #{_positionwise_ffn_impl.1} parent=5 // pred_check
        _
      $region10: #{_positionwise_ffn_impl.1} parent=5 // pred_check_branch
        %213 = sbr.rel (%p210) target = $region12
      $region11: #{_positionwise_ffn_impl.1} parent=5 // pred_region
        %s214 = ssub.s32 %s22, 1
        // Predicated region
        $region13: #{_positionwise_ffn_impl.1} parent=11 // pred_check
          %p215 = pneg %p69
        $region14: #{_positionwise_ffn_impl.1} parent=11 // pred_check_branch
          %217 = sbr.rel (%p215) target = $region16
        $region15: #{_positionwise_ffn_impl.1} parent=11 // pred_region
          %s219 = ssub.s32 2048, 2048
          %220 = vsyncadd [#allocation6], %s219
          %s221 = sshll.u32 [#allocation5], 4
          %s222 = int_to_ptr.vmem [resolvable:$true] %s221
          %227 = dma.hbm_to_vmem [thread:$0]  %s1, 2048, %s222, [#allocation6], 128, 128, 8
        $region16: #{_positionwise_ffn_impl.1} parent=11 // pred_fallthru
          _
        // Predicated region
        $region17: #{_positionwise_ffn_impl.1} parent=11 // pred_check
          %p228 = pneg %p90
        $region18: #{_positionwise_ffn_impl.1} parent=11 // pred_check_branch
          %230 = sbr.rel (%p228) target = $region20
        $region19: #{_positionwise_ffn_impl.1} parent=11 // pred_region
          %s232 = ssub.s32 32, 32
          %233 = vsyncadd [#allocation6], %s232
          %s235 = sshll.u32 [#allocation7], 4
          %s236 = int_to_ptr.vmem [resolvable:$true] %s235
          %238 = dma.hbm_to_vmem [thread:$0]  %s2, 32, %s236, [#allocation6]
        $region20: #{_positionwise_ffn_impl.1} parent=11 // pred_fallthru
          _
        // Predicated region
        $region21: #{_positionwise_ffn_impl.1} parent=11 // pred_check
          %p239 = pneg %p111
        $region22: #{_positionwise_ffn_impl.1} parent=11 // pred_check_branch
          %241 = sbr.rel (%p239) target = $region24
        $region23: #{_positionwise_ffn_impl.1} parent=11 // pred_region
          %s243 = ssub.s32 2048, 2048
          %244 = vsyncadd [#allocation9], %s243
          %s245 = sshll.u32 [#allocation8], 4
          %s246 = int_to_ptr.vmem [resolvable:$true] %s245
          %251 = dma.hbm_to_vmem [thread:$0]  %s3, 2048, %s246, [#allocation9], 64, 64, 4
        $region24: #{_positionwise_ffn_impl.1} parent=11 // pred_fallthru
          _
        // Predicated region
        $region25: #{_positionwise_ffn_impl.1} parent=11 // pred_check
          %p252 = pneg %p132
        $region26: #{_positionwise_ffn_impl.1} parent=11 // pred_check_branch
          %254 = sbr.rel (%p252) target = $region28
        $region27: #{_positionwise_ffn_impl.1} parent=11 // pred_region
          %s256 = ssub.s32 16, 16
          %257 = vsyncadd [#allocation9], %s256
          %s259 = sshll.u32 [#allocation10], 4
          %s260 = int_to_ptr.vmem [resolvable:$true] %s259
          %262 = dma.hbm_to_vmem [thread:$0]  %s4, 16, %s260, [#allocation9]
        $region28: #{_positionwise_ffn_impl.1} parent=11 // pred_fallthru
          _
        // Predicated region
        $region29: #{_positionwise_ffn_impl.1} parent=11 // pred_check
          %p263 = pneg %p153
        $region30: #{_positionwise_ffn_impl.1} parent=11 // pred_check_branch
          %265 = sbr.rel (%p263) target = $region32
        $region31: #{_positionwise_ffn_impl.1} parent=11 // pred_region
          %s267 = ssub.s32 16, 16
          %268 = vsyncadd [#allocation12], %s267
          %s270 = sshll.u32 [#allocation11], 4
          %s271 = int_to_ptr.vmem [resolvable:$true] %s270
          %273 = dma.hbm_to_vmem [thread:$0]  %s5, 16, %s271, [#allocation12]
        $region32: #{_positionwise_ffn_impl.1} parent=11 // pred_fallthru
          _
        // Predicated region
        $region33: #{_positionwise_ffn_impl.1} parent=11 // pred_check
          %p274 = pneg %p174
        $region34: #{_positionwise_ffn_impl.1} parent=11 // pred_check_branch
          %276 = sbr.rel (%p274) target = $region36
        $region35: #{_positionwise_ffn_impl.1} parent=11 // pred_region
          %s278 = ssub.s32 16, 16
          %279 = vsyncadd [#allocation12], %s278
          %s281 = sshll.u32 [#allocation13], 4
          %s282 = int_to_ptr.vmem [resolvable:$true] %s281
          %284 = dma.hbm_to_vmem [thread:$0]  %s6, 16, %s282, [#allocation12]
        $region36: #{_positionwise_ffn_impl.1} parent=11 // pred_fallthru
          _
      $region12: #{_positionwise_ffn_impl.1} parent=5 // pred_fallthru
        _
      %p285 = scmp.lt.s32.totalorder %s22, 2
      // Predicated region
      $region37: #{_positionwise_ffn_impl.1} parent=5 // pred_check
        %p286 = pneg %p285
      $region38: #{_positionwise_ffn_impl.1} parent=5 // pred_check_branch
        %288 = sbr.rel (%p286) target = $region40
      $region39: #{_positionwise_ffn_impl.1} parent=5 // pred_region
        // Predicated region
        $region41: #{_positionwise_ffn_impl.1} parent=39 // pred_check
          %p289 = pneg %p42
        $region42: #{_positionwise_ffn_impl.1} parent=39 // pred_check_branch
          %291 = sbr.rel (%p289) target = $region44
        $region43: #{_positionwise_ffn_impl.1} parent=39 // pred_region
          %s292 = sand.u32 %s32, 1
          %s293 = scalar_lea.sflag [#allocation3], %s292
          %s294 = sand.u32 %s32, 1
          %s295 = smul.addr %s294, 8
          %s296 = scalar_lea.vmem [#allocation2], %s295
          %s298 = ssub.s32 128, 128
          %299 = vsyncadd %s293, %s298
          %s300 = smul.addr %s22, 128
          %s301 = scalar_lea.hbm %s0, %s300
          %s303 = sshll.u32 %s296, 4
          %s304 = int_to_ptr.vmem [resolvable:$true] %s303
          %306 = dma.hbm_to_vmem [thread:$0]  %s301, 128, %s304, %s293
        $region44: #{_positionwise_ffn_impl.1} parent=39 // pred_fallthru
          _
      $region40: #{_positionwise_ffn_impl.1} parent=5 // pred_fallthru
        _
      %p307 = scmp.le.s32.totalorder 1, %s22
      %p308 = scmp.lt.s32.totalorder %s22, 3
      %p309 = pnand %p307, %p308
      %p310 = pneg %p309
      // Predicated region
      $region45: #{_positionwise_ffn_impl.1} parent=5 // pred_check
        _
      $region46: #{_positionwise_ffn_impl.1} parent=5 // pred_check_branch
        %312 = sbr.rel (%p309) target = $region48
      $region47: #{_positionwise_ffn_impl.1} parent=5 // pred_region
        %s313 = ssub.s32 %s22, 1
        %s314 = sand.u32 %s35, 1
        %s315 = scalar_lea.sflag [#allocation3], %s314
        %s316 = sand.u32 %s35, 1
        %s317 = smul.addr %s316, 8
        %s318 = scalar_lea.vmem [#allocation2], %s317
        // Predicated region
        $region49: #{_positionwise_ffn_impl.1} parent=47 // pred_check
          %p319 = pneg %p48
        $region50: #{_positionwise_ffn_impl.1} parent=47 // pred_check_branch
          %321 = sbr.rel (%p319) target = $region52
        $region51: #{_positionwise_ffn_impl.1} parent=47 // pred_region
          %322 = dma.done %s315, 128
        $region52: #{_positionwise_ffn_impl.1} parent=47 // pred_fallthru
          _
        // Predicated region
        $region53: #{_positionwise_ffn_impl.1} parent=47 // pred_check
          %p323 = pneg %p69
        $region54: #{_positionwise_ffn_impl.1} parent=47 // pred_check_branch
          %325 = sbr.rel (%p323) target = $region56
        $region55: #{_positionwise_ffn_impl.1} parent=47 // pred_region
          %326 = dma.done [#allocation6], 2048
        $region56: #{_positionwise_ffn_impl.1} parent=47 // pred_fallthru
          _
        // Predicated region
        $region57: #{_positionwise_ffn_impl.1} parent=47 // pred_check
          %p327 = pneg %p90
        $region58: #{_positionwise_ffn_impl.1} parent=47 // pred_check_branch
          %329 = sbr.rel (%p327) target = $region60
        $region59: #{_positionwise_ffn_impl.1} parent=47 // pred_region
          %330 = dma.done [#allocation6], 32
        $region60: #{_positionwise_ffn_impl.1} parent=47 // pred_fallthru
          _
        // Predicated region
        $region61: #{_positionwise_ffn_impl.1} parent=47 // pred_check
          %p331 = pneg %p111
        $region62: #{_positionwise_ffn_impl.1} parent=47 // pred_check_branch
          %333 = sbr.rel (%p331) target = $region64
        $region63: #{_positionwise_ffn_impl.1} parent=47 // pred_region
          %334 = dma.done [#allocation9], 2048
        $region64: #{_positionwise_ffn_impl.1} parent=47 // pred_fallthru
          _
        // Predicated region
        $region65: #{_positionwise_ffn_impl.1} parent=47 // pred_check
          %p335 = pneg %p132
        $region66: #{_positionwise_ffn_impl.1} parent=47 // pred_check_branch
          %337 = sbr.rel (%p335) target = $region68
        $region67: #{_positionwise_ffn_impl.1} parent=47 // pred_region
          %338 = dma.done [#allocation9], 16
        $region68: #{_positionwise_ffn_impl.1} parent=47 // pred_fallthru
          _
        // Predicated region
        $region69: #{_positionwise_ffn_impl.1} parent=47 // pred_check
          %p339 = pneg %p153
        $region70: #{_positionwise_ffn_impl.1} parent=47 // pred_check_branch
          %341 = sbr.rel (%p339) target = $region72
        $region71: #{_positionwise_ffn_impl.1} parent=47 // pred_region
          %342 = dma.done [#allocation12], 16
        $region72: #{_positionwise_ffn_impl.1} parent=47 // pred_fallthru
          _
        // Predicated region
        $region73: #{_positionwise_ffn_impl.1} parent=47 // pred_check
          %p343 = pneg %p174
        $region74: #{_positionwise_ffn_impl.1} parent=47 // pred_check_branch
          %345 = sbr.rel (%p343) target = $region76
        $region75: #{_positionwise_ffn_impl.1} parent=47 // pred_region
          %346 = dma.done [#allocation12], 16
        $region76: #{_positionwise_ffn_impl.1} parent=47 // pred_fallthru
          _
        %s347 = sand.u32 %s35, 1
        %s348 = scalar_lea.sflag [#allocation3], %s347
        %s349 = sand.u32 %s35, 1
        %s350 = smul.addr %s349, 8
        %s351 = scalar_lea.vmem [#allocation2], %s350
        %p352 = pneg %p48
        %p353 = pneg %p45
        %p354 = pneg %p69
        %p355 = pneg %p66
        %p356 = pneg %p90
        %p357 = pneg %p87
        %p358 = pneg %p111
        %p359 = pneg %p108
        %p360 = pneg %p132
        %p361 = pneg %p129
        %p362 = pneg %p153
        %p363 = pneg %p150
        %p364 = pneg %p174
        %p365 = pneg %p171
        %p366 = pneg %p200
        %p367 = pneg %p197
        %s368 = sand.u32 %s187, 1
        %s369 = scalar_lea.sflag [#allocation4], %s368
        %s370 = sand.u32 %s187, 1
        %s371 = smul.addr %s370, 8
        %s372 = scalar_lea.vmem [#allocation14], %s371
        %v374 = vld [vmem:[%s318] sm:$0xff]
        %v375 = vpack.c.bf16 %v374, %v374
        %v376 = vld [vmem:[#allocation5] sm:$0xff]
        %v377 = vld [vmem:[#allocation5 + $0x8] sm:$0xff]
        %v378 = vld [vmem:[#allocation5 + $0x10] sm:$0xff]
        %v379 = vld [vmem:[#allocation5 + $0x18] sm:$0xff]
        %v380 = vld [vmem:[#allocation5 + $0x20] sm:$0xff]
        %v381 = vld [vmem:[#allocation5 + $0x28] sm:$0xff]
        %v382 = vld [vmem:[#allocation5 + $0x30] sm:$0xff]
        %v383 = vld [vmem:[#allocation5 + $0x38] sm:$0xff]
        %v384 = vld [vmem:[#allocation5 + $0x40] sm:$0xff]
        %v385 = vld [vmem:[#allocation5 + $0x48] sm:$0xff]
        %v386 = vld [vmem:[#allocation5 + $0x50] sm:$0xff]
        %v387 = vld [vmem:[#allocation5 + $0x58] sm:$0xff]
        %v388 = vld [vmem:[#allocation5 + $0x60] sm:$0xff]
        %v389 = vld [vmem:[#allocation5 + $0x68] sm:$0xff]
        %v390 = vld [vmem:[#allocation5 + $0x70] sm:$0xff]
        %v391 = vld [vmem:[#allocation5 + $0x78] sm:$0xff]
        %v392 = vld [vmem:[#allocation7] sm:$0x3]
        %v394 = vlaneseq
        %v395 = vshrl.u32 %v394, 7
        %v396 = vsub.s32 0, %v395
        %v397 = vrot.slane %v392, %v396
        %v398 = vlaneseq
        %v399 = vshrl.u32 %v398, 7
        %v400 = vsub.s32 1, %v399
        %v401 = vrot.slane %v392, %v400
        %v420 = vunpack.c.l.b16 %v376
        %v421 = vunpack.c.h.b16 %v376
        %v422 = vunpack.c.l.b16 %v377
        %v423 = vunpack.c.h.b16 %v377
        %v424 = vunpack.c.l.b16 %v378
        %v425 = vunpack.c.h.b16 %v378
        %v426 = vunpack.c.l.b16 %v379
        %v427 = vunpack.c.h.b16 %v379
        %v428 = vunpack.c.l.b16 %v380
        %v429 = vunpack.c.h.b16 %v380
        %v430 = vunpack.c.l.b16 %v381
        %v431 = vunpack.c.h.b16 %v381
        %v432 = vunpack.c.l.b16 %v382
        %v433 = vunpack.c.h.b16 %v382
        %v434 = vunpack.c.l.b16 %v383
        %v435 = vunpack.c.h.b16 %v383
        %v436 = vunpack.c.l.b16 %v384
        %v437 = vunpack.c.h.b16 %v384
        %v438 = vunpack.c.l.b16 %v385
        %v439 = vunpack.c.h.b16 %v385
        %v440 = vunpack.c.l.b16 %v386
        %v441 = vunpack.c.h.b16 %v386
        %v442 = vunpack.c.l.b16 %v387
        %v443 = vunpack.c.h.b16 %v387
        %v444 = vunpack.c.l.b16 %v388
        %v445 = vunpack.c.h.b16 %v388
        %v446 = vunpack.c.l.b16 %v389
        %v447 = vunpack.c.h.b16 %v389
        %v448 = vunpack.c.l.b16 %v390
        %v449 = vunpack.c.h.b16 %v390
        %v450 = vunpack.c.l.b16 %v391
        %v451 = vunpack.c.h.b16 %v391
        %v452 = vpack.c.b16 %v422, %v420
        %v453 = vpack.c.b16 %v423, %v421
        %v454 = vpack.c.b16 %v426, %v424
        %v455 = vpack.c.b16 %v427, %v425
        %v456 = vpack.c.b16 %v430, %v428
        %v457 = vpack.c.b16 %v431, %v429
        %v458 = vpack.c.b16 %v434, %v432
        %v459 = vpack.c.b16 %v435, %v433
        %v460 = vpack.c.b16 %v438, %v436
        %v461 = vpack.c.b16 %v439, %v437
        %v462 = vpack.c.b16 %v442, %v440
        %v463 = vpack.c.b16 %v443, %v441
        %v464 = vpack.c.b16 %v446, %v444
        %v465 = vpack.c.b16 %v447, %v445
        %v466 = vpack.c.b16 %v450, %v448
        %v467 = vpack.c.b16 %v451, %v449
        %484 = vmatprep.subr.bf16.mxu0 %v453
        %485 = vmatpush1.bf16.msra.mxu0 %v452
        %486 = vmatprep.subr.bf16.mxu0 %v455
        %487 = vmatpush1.bf16.msra.mxu0 %v454
        %488 = vmatprep.subr.bf16.mxu0 %v457
        %489 = vmatpush1.bf16.msra.mxu0 %v456
        %490 = vmatprep.subr.bf16.mxu0 %v459
        %491 = vmatpush1.bf16.msra.mxu0 %v458
        %492 = vmatprep.subr.bf16.mxu0 %v461
        %493 = vmatpush1.bf16.msra.mxu0 %v460
        %494 = vmatprep.subr.bf16.mxu0 %v463
        %495 = vmatpush1.bf16.msra.mxu0 %v462
        %496 = vmatprep.subr.bf16.mxu0 %v465
        %497 = vmatpush1.bf16.msra.mxu0 %v464
        %498 = vmatprep.subr.bf16.mxu0 %v467
        %499 = vmatpush1.bf16.msra.mxu0 %v466
        %500 = vmatprep.subr.bf16.mxu0 0
        %501 = vmatpush1.bf16.msra.mxu0 0
        %502 = vmatprep.subr.bf16.mxu0 0
        %503 = vmatpush1.bf16.msra.mxu0 0
        %504 = vmatprep.subr.bf16.mxu0 0
        %505 = vmatpush1.bf16.msra.mxu0 0
        %506 = vmatprep.subr.bf16.mxu0 0
        %507 = vmatpush1.bf16.msra.mxu0 0
        %508 = vmatprep.subr.bf16.mxu0 0
        %509 = vmatpush1.bf16.msra.mxu0 0
        %510 = vmatprep.subr.bf16.mxu0 0
        %511 = vmatpush1.bf16.msra.mxu0 0
        %512 = vmatprep.subr.bf16.mxu0 0
        %513 = vmatpush1.bf16.msra.mxu0 0
        %514 = vmatprep.subr.bf16.mxu0 0
        %515 = vmatpush1.bf16.msra.mxu0 0
        %516 = vmatprep.mubr.bf16.mxu0 0
        %517 = vmatmul.mubr.bf16.gmra.mrb[0].mxu0 %v375
        %v518 = vpop.f32.mrb[0].mxu0
        %v519 = vadd.f32 %v397, %v518
        %v520 = vpop.f32.mrb[0].mxu0
        %v521 = vadd.f32 %v401, %v520
        %v522 = vpop.f32.mrb[0].mxu0
        %v523 = vpop.f32.mrb[0].mxu0
        %524 = vdwg.mxu0
        %v525 = vmax.f32 %v519, 0.0
        %v526 = vmax.f32 %v521, 0.0
        %v527 = vpack.c.bf16 %v525, %v525
        %v528 = vpack.c.bf16 %v526, %v526
        %v529 = vld [vmem:[#allocation8] sm:$0xf]
        %v530 = vld [vmem:[#allocation8 + $0x4] sm:$0xf]
        %v531 = vld [vmem:[#allocation8 + $0x8] sm:$0xf]
        %v532 = vld [vmem:[#allocation8 + $0xc] sm:$0xf]
        %v533 = vld [vmem:[#allocation8 + $0x10] sm:$0xf]
        %v534 = vld [vmem:[#allocation8 + $0x14] sm:$0xf]
        %v535 = vld [vmem:[#allocation8 + $0x18] sm:$0xf]
        %v536 = vld [vmem:[#allocation8 + $0x1c] sm:$0xf]
        %v537 = vld [vmem:[#allocation8 + $0x20] sm:$0xf]
        %v538 = vld [vmem:[#allocation8 + $0x24] sm:$0xf]
        %v539 = vld [vmem:[#allocation8 + $0x28] sm:$0xf]
        %v540 = vld [vmem:[#allocation8 + $0x2c] sm:$0xf]
        %v541 = vld [vmem:[#allocation8 + $0x30] sm:$0xf]
        %v542 = vld [vmem:[#allocation8 + $0x34] sm:$0xf]
        %v543 = vld [vmem:[#allocation8 + $0x38] sm:$0xf]
        %v544 = vld [vmem:[#allocation8 + $0x3c] sm:$0xf]
        %v545 = vld [vmem:[#allocation8 + $0x40] sm:$0xf]
        %v546 = vld [vmem:[#allocation8 + $0x44] sm:$0xf]
        %v547 = vld [vmem:[#allocation8 + $0x48] sm:$0xf]
        %v548 = vld [vmem:[#allocation8 + $0x4c] sm:$0xf]
        %v549 = vld [vmem:[#allocation8 + $0x50] sm:$0xf]
        %v550 = vld [vmem:[#allocation8 + $0x54] sm:$0xf]
        %v551 = vld [vmem:[#allocation8 + $0x58] sm:$0xf]
        %v552 = vld [vmem:[#allocation8 + $0x5c] sm:$0xf]
        %v553 = vld [vmem:[#allocation8 + $0x60] sm:$0xf]
        %v554 = vld [vmem:[#allocation8 + $0x64] sm:$0xf]
        %v555 = vld [vmem:[#allocation8 + $0x68] sm:$0xf]
        %v556 = vld [vmem:[#allocation8 + $0x6c] sm:$0xf]
        %v557 = vld [vmem:[#allocation8 + $0x70] sm:$0xf]
        %v558 = vld [vmem:[#allocation8 + $0x74] sm:$0xf]
        %v559 = vld [vmem:[#allocation8 + $0x78] sm:$0xf]
        %v560 = vld [vmem:[#allocation8 + $0x7c] sm:$0xf]
        %v593 = vunpack.c.l.b16 %v529
        %v594 = vunpack.c.l.b16 %v530
        %v595 = vunpack.c.l.b16 %v531
        %v596 = vunpack.c.l.b16 %v532
        %v597 = vunpack.c.l.b16 %v533
        %v598 = vunpack.c.l.b16 %v534
        %v599 = vunpack.c.l.b16 %v535
        %v600 = vunpack.c.l.b16 %v536
        %v601 = vunpack.c.l.b16 %v537
        %v602 = vunpack.c.l.b16 %v538
        %v603 = vunpack.c.l.b16 %v539
        %v604 = vunpack.c.l.b16 %v540
        %v605 = vunpack.c.l.b16 %v541
        %v606 = vunpack.c.l.b16 %v542
        %v607 = vunpack.c.l.b16 %v543
        %v608 = vunpack.c.l.b16 %v544
        %v609 = vunpack.c.l.b16 %v545
        %v610 = vunpack.c.l.b16 %v546
        %v611 = vunpack.c.l.b16 %v547
        %v612 = vunpack.c.l.b16 %v548
        %v613 = vunpack.c.l.b16 %v549
        %v614 = vunpack.c.l.b16 %v550
        %v615 = vunpack.c.l.b16 %v551
        %v616 = vunpack.c.l.b16 %v552
        %v617 = vunpack.c.l.b16 %v553
        %v618 = vunpack.c.l.b16 %v554
        %v619 = vunpack.c.l.b16 %v555
        %v620 = vunpack.c.l.b16 %v556
        %v621 = vunpack.c.l.b16 %v557
        %v622 = vunpack.c.l.b16 %v558
        %v623 = vunpack.c.l.b16 %v559
        %v624 = vunpack.c.l.b16 %v560
        %v625 = vpack.c.b16 %v594, %v593
        %v626 = vpack.c.b16 %v596, %v595
        %v627 = vpack.c.b16 %v598, %v597
        %v628 = vpack.c.b16 %v600, %v599
        %v629 = vpack.c.b16 %v602, %v601
        %v630 = vpack.c.b16 %v604, %v603
        %v631 = vpack.c.b16 %v606, %v605
        %v632 = vpack.c.b16 %v608, %v607
        %v633 = vpack.c.b16 %v610, %v609
        %v634 = vpack.c.b16 %v612, %v611
        %v635 = vpack.c.b16 %v614, %v613
        %v636 = vpack.c.b16 %v616, %v615
        %v637 = vpack.c.b16 %v618, %v617
        %v638 = vpack.c.b16 %v620, %v619
        %v639 = vpack.c.b16 %v622, %v621
        %v640 = vpack.c.b16 %v624, %v623
        %657 = vmatprep.subr.bf16.mxu0 0
        %658 = vmatpush1.bf16.msra.mxu0 %v625
        %659 = vmatprep.subr.bf16.mxu0 0
        %660 = vmatpush1.bf16.msra.mxu0 %v626
        %661 = vmatprep.subr.bf16.mxu0 0
        %662 = vmatpush1.bf16.msra.mxu0 %v627
        %663 = vmatprep.subr.bf16.mxu0 0
        %664 = vmatpush1.bf16.msra.mxu0 %v628
        %665 = vmatprep.subr.bf16.mxu0 0
        %666 = vmatpush1.bf16.msra.mxu0 %v629
        %667 = vmatprep.subr.bf16.mxu0 0
        %668 = vmatpush1.bf16.msra.mxu0 %v630
        %669 = vmatprep.subr.bf16.mxu0 0
        %670 = vmatpush1.bf16.msra.mxu0 %v631
        %671 = vmatprep.subr.bf16.mxu0 0
        %672 = vmatpush1.bf16.msra.mxu0 %v632
        %673 = vmatprep.subr.bf16.mxu0 0
        %674 = vmatpush1.bf16.msra.mxu0 %v633
        %675 = vmatprep.subr.bf16.mxu0 0
        %676 = vmatpush1.bf16.msra.mxu0 %v634
        %677 = vmatprep.subr.bf16.mxu0 0
        %678 = vmatpush1.bf16.msra.mxu0 %v635
        %679 = vmatprep.subr.bf16.mxu0 0
        %680 = vmatpush1.bf16.msra.mxu0 %v636
        %681 = vmatprep.subr.bf16.mxu0 0
        %682 = vmatpush1.bf16.msra.mxu0 %v637
        %683 = vmatprep.subr.bf16.mxu0 0
        %684 = vmatpush1.bf16.msra.mxu0 %v638
        %685 = vmatprep.subr.bf16.mxu0 0
        %686 = vmatpush1.bf16.msra.mxu0 %v639
        %687 = vmatprep.subr.bf16.mxu0 0
        %688 = vmatpush1.bf16.msra.mxu0 %v640
        %689 = vmatprep.mubr.bf16.mxu0 %v528
        %690 = vmatmul.mubr.bf16.gmra.mrb[0].mxu0 %v527
        %v691 = vpop.f32.mrb[0].mxu0
        %v692 = vadd.f32 0.0, %v691
        %v693 = vpop.f32.mrb[0].mxu0
        %v694 = vpop.f32.mrb[0].mxu0
        %v695 = vpop.f32.mrb[0].mxu0
        %696 = vdwg.mxu0
        %v697 = vadd.f32 %v374, %v692
        %v698 = vld [vmem:[#allocation10] sm:$0x1]
        %v700 = vlaneseq
        %v701 = vshrl.u32 %v700, 7
        %v702 = vsub.s32 0, %v701
        %v703 = vrot.slane %v698, %v702
        %v705 = vadd.f32 %v697, %v703
        %v706 = vld [vmem:[#allocation11] sm:$0x1]
        %v707 = vld [vmem:[#allocation13] sm:$0x1]
        %708 = vadd.xlane.f32.xlu0 %v705
        %v709 = vpop.xlane.xlu0 %708
        %v710 = vmul.f32 %v709, 0.0078125
        %v711 = vsub.f32 %v705, %v710
        %v712 = vmul.f32 %v711, %v711
        %713 = vadd.xlane.f32.xlu0 %v712
        %v714 = vpop.xlane.xlu0 %713
        %v715 = vmul.f32 %v714, 0.0078125
        %v716 = vadd.f32 %v715, 1e-05
        %v717 = vrsqrt.pop %v716
        %v718 = vmul.f32 %v711, %v717
        %v720 = vlaneseq
        %v721 = vshrl.u32 %v720, 7
        %v722 = vsub.s32 0, %v721
        %v723 = vrot.slane %v706, %v722
        %v725 = vmul.f32 %v718, %v723
        %v727 = vlaneseq
        %v728 = vshrl.u32 %v727, 7
        %v729 = vsub.s32 0, %v728
        %v730 = vrot.slane %v707, %v729
        %v732 = vadd.f32 %v725, %v730
        %733 = vst [vmem:[%s372] sm:$0xff] %v732
        %s734 = sand.u32 %s187, 1
        %s735 = scalar_lea.sflag [#allocation4], %s734
        %s736 = sand.u32 %s187, 1
        %s737 = smul.addr %s736, 8
        %s738 = scalar_lea.vmem [#allocation14], %s737
        // Predicated region
        $region77: #{_positionwise_ffn_impl.1} parent=47 // pred_check
          %p739 = pneg %p197
        $region78: #{_positionwise_ffn_impl.1} parent=47 // pred_check_branch
          %741 = sbr.rel (%p739) target = $region80
        $region79: #{_positionwise_ffn_impl.1} parent=47 // pred_region
          %s743 = ssub.s32 128, 128
          %744 = vsyncadd %s735, %s743
          %s745 = smul.addr %s27, 128
          %s746 = scalar_lea.hbm %s7, %s745
          %s748 = sshll.u32 %s738, 4
          %s749 = int_to_ptr.vmem [resolvable:$true] %s748
          %751 = dma.vmem_to_hbm [thread:$0]  %s749, 128, %s746, %s735
        $region80: #{_positionwise_ffn_impl.1} parent=47 // pred_fallthru
          _
      $region48: #{_positionwise_ffn_impl.1} parent=5 // pred_fallthru
        _
      %p752 = scmp.le.s32.totalorder 2, %s22
      // Predicated region
      $region81: #{_positionwise_ffn_impl.1} parent=5 // pred_check
        %p753 = pneg %p752
      $region82: #{_positionwise_ffn_impl.1} parent=5 // pred_check_branch
        %755 = sbr.rel (%p753) target = $region84
      $region83: #{_positionwise_ffn_impl.1} parent=5 // pred_region
        %s756 = ssub.s32 %s22, 2
        // Predicated region
        $region85: #{_positionwise_ffn_impl.1} parent=83 // pred_check
          %p757 = pneg %p203
        $region86: #{_positionwise_ffn_impl.1} parent=83 // pred_check_branch
          %759 = sbr.rel (%p757) target = $region88
        $region87: #{_positionwise_ffn_impl.1} parent=83 // pred_region
          %s760 = sand.u32 %s188, 1
          %s761 = scalar_lea.sflag [#allocation4], %s760
          %s762 = sand.u32 %s188, 1
          %s763 = smul.addr %s762, 8
          %s764 = scalar_lea.vmem [#allocation14], %s763
          %765 = dma.done %s761, 128
        $region88: #{_positionwise_ffn_impl.1} parent=83 // pred_fallthru
          _
      $region84: #{_positionwise_ffn_impl.1} parent=5 // pred_fallthru
        _
    $region6: #{_positionwise_ffn_impl.1} parent=1 // loop_footer
      %s26 = sadd.s32 1, %s22
    $region7: #{_positionwise_ffn_impl.1} parent=1 // loop_footer_branch
      %21 = sbr.rel target = $region3
    $region8: #{_positionwise_ffn_impl.1} parent=1 // loop_exit
      _
    %766 = vsyncpa [#allocation3], 1
    %s767 = scalar_lea.sflag [#allocation3], 1
    %768 = vsyncpa %s767, 1
    %769 = vsyncpa [#allocation6], 1
    %770 = vsyncpa [#allocation9], 1
    %771 = vsyncpa [#allocation12], 1
    %772 = vsyncpa [#allocation4], 1
    %s773 = scalar_lea.sflag [#allocation4], 1
    %774 = vsyncpa %s773, 1

</llo_original>
